<compile_context>
chip_gen: v6e
topology: v6e:2x2x1
jax: 0.10.0
libtpu: 0.0.40
codegen_flags: <defaults>
</compile_context>

<pallas_src>
import functools

import jax
import jax.numpy as jnp
from jax.experimental import pallas as pl
from jax.experimental.pallas import tpu as pltpu


def _round_up(n, m):
    return ((n + m - 1) // m) * m


def _ce_loss_kernel(x_ref, t_ref, partial_ref, *, total_cols, tile_cols, mask_cols):
    """One grid step: cross-entropy over a lane-dense (C, TILE_COLS) logits block.

    x_ref:       (C, TL) logits block (classes on sublanes, examples on lanes)
    t_ref:       (1, TL) int32 target class indices (lane-dense row)
    partial_ref: (1, 8, 128) float32 per-tile partial sum (lane-dense output block)
    """
    x = x_ref[...].astype(jnp.float32)                          # (C, TL) f32
    t = t_ref[...]                                              # (1, TL) i32

    if mask_cols:
        # Ragged last tile: lanes past the true column count hold garbage from
        # the edge-padded DMA. Zero the logits (select, so NaN garbage is
        # harmless) and zero those lanes' losses below.
        col0 = pl.program_id(1) * tile_cols
        cid = col0 + jax.lax.broadcasted_iota(jnp.int32, (1, tile_cols), 1)
        valid = cid < total_cols                                # (1, TL) bool
        x = jnp.where(valid, x, 0.0)

    # Numerically stable log-sum-exp over the class (sublane) axis: C-row
    # sublane reductions, not 128-lane XLU reductions.
    m = jnp.max(x, axis=0, keepdims=True)                       # (1, TL)
    e = jnp.exp(x - m)
    lse = jnp.log(jnp.sum(e, axis=0, keepdims=True)) + m        # (1, TL)

    # Fused one-hot gather of the target-class logit: sublane iota compared
    # against the lane-dense target row (sublane broadcast), then a C-row sum.
    cls = jax.lax.broadcasted_iota(jnp.int32, x.shape, 0)       # (C, TL)
    x_t = jnp.sum(jnp.where(cls == t, x, 0.0), axis=0, keepdims=True)  # (1, TL)

    loss = lse - x_t                                            # (1, TL) = -log p_t
    if mask_cols:
        loss = jnp.where(valid, loss, 0.0)

    # One reduction per tile; each tile owns its own output block (parallel grid).
    partial_ref[...] = jnp.broadcast_to(jnp.sum(loss), partial_ref.shape)


def cross_entropy_loss(outputs, targets, *, reduction="mean", tile_cols=None):
    """Pallas forward of nn.CrossEntropyLoss (default mean reduction).

    outputs: (N, C) logits or (N, C, *spatial) NCHW-style logits
    targets: integer class indices, total elements == N * prod(spatial)
    """
    if outputs.ndim > 2:
        # NCHW-style: native layout already has classes on the second-to-last
        # axis and spatial positions lane-dense -> free reshape, no transpose.
        N, C = outputs.shape[0], outputs.shape[1]
        L = 1
        for d in outputs.shape[2:]:
            L *= d
        x3 = outputs.reshape(N, C, L)
        t3 = targets.reshape(N, 1, L).astype(jnp.int32)
        B = N
    else:
        # (N, C) logits: one wrapper transpose so examples are lane-dense in
        # the kernel (the kernel is otherwise vector-op bound, not HBM bound).
        # TODO(synk): for very large N, a non-transposed (rows, C) variant with
        # the two class-axis sums offloaded to the MXU would avoid this extra
        # HBM pass.
        N, C = outputs.shape
        x3 = outputs.T.reshape(1, C, N)
        t3 = targets.reshape(1, 1, N).astype(jnp.int32)
        B, L = 1, N

    # --- tile sizing: lane-padding-aware VMEM accounting ---------------------
    itemsize = jnp.dtype(x3.dtype).itemsize
    sub_in = 8 if itemsize >= 4 else (16 if itemsize == 2 else 32)
    c_in = _round_up(C, sub_in)          # sublane-padded rows of the input block
    c_f32 = _round_up(C, 8)              # sublane-padded rows of f32 temporaries
    bytes_per_col = (
        2 * (c_in * itemsize + 8 * 4)    # double-buffered logits + (1,TL) i32 targets
        + 4 * c_f32 * 4                  # f32 working copies (x, e, one-hot select, ...)
        + 8 * 8 * 4                      # handful of (1, TL) f32/i32 rows
    )
    if tile_cols is None:
        vmem_budget = 16 * 1024 * 1024
        tile_cols = max(128, min(8192, vmem_budget // max(bytes_per_col, 1)))
    if B == 1 and L > 128:
        # v7x: keep >= 2 grid steps so both TensorCores get work (free on v5e/v6e).
        tile_cols = min(tile_cols, _round_up(pl.cdiv(L, 2), 128))
    if L <= 128:
        tile_cols = L                    # single full-extent tile
    else:
        tile_cols = _round_up(min(tile_cols, _round_up(L, 128)), 128)
    n_col_tiles = pl.cdiv(L, tile_cols)
    mask_cols = (L % tile_cols) != 0

    # Right-sized scoped VMEM (estimate x2 margin), never more than 32 MiB.
    vmem_limit = int(min(32 * 1024 * 1024,
                         max(8 * 1024 * 1024, 2 * tile_cols * bytes_per_col)))

    kernel = functools.partial(
        _ce_loss_kernel, total_cols=L, tile_cols=tile_cols, mask_cols=mask_cols)

    n_out = B * n_col_tiles
    partials = pl.pallas_call(
        kernel,
        out_shape=jax.ShapeDtypeStruct((n_out, 8, 128), jnp.float32),
        grid_spec=pltpu.PrefetchScalarGridSpec(
            num_scalar_prefetch=0,
            grid=(B, n_col_tiles),
            in_specs=[
                # (C, tile_cols) logits block, batch dim squeezed away.
                pl.BlockSpec((None, C, tile_cols), lambda b, j: (b, 0, j)),
                # (1, tile_cols) lane-dense int32 targets block.
                pl.BlockSpec((None, 1, tile_cols), lambda b, j: (b, 0, j)),
            ],
            out_specs=pl.BlockSpec(
                (1, 8, 128), lambda b, j: (b * n_col_tiles + j, 0, 0)),
        ),
        compiler_params=pltpu.CompilerParams(
            # independent per-tile partial sums -> both TensorCores usable on v7x
            dimension_semantics=("parallel", "parallel"),
            vmem_limit_bytes=vmem_limit,
        ),
    )(x3, t3)

    total = jnp.sum(partials[:, 0, 0])
    if reduction == "mean":
        return total / jnp.float32(B * L)
    return total


class CELoss:
    """Mirror of core_ml/robust4.py CELoss: alpha/beta stored but unused in forward."""

    def __init__(self, alpha=0.1, beta=0.1, num_classes=10):
        self.alpha = alpha
        self.beta = beta
        self.num_classes = num_classes

    def __call__(self, outputs, targets):
        return cross_entropy_loss(outputs, targets)


def _reference_ce(outputs, targets):
    """Pure-JAX reference mirroring nn.CrossEntropyLoss (mean reduction)."""
    if outputs.ndim > 2:
        N, C = outputs.shape[0], outputs.shape[1]
        x = jnp.moveaxis(outputs.reshape(N, C, -1), 1, 2).reshape(-1, C)
    else:
        x = outputs
    t = targets.reshape(-1)
    logp = jax.nn.log_softmax(x.astype(jnp.float32), axis=1)
    nll = -jnp.take_along_axis(logp, t[:, None].astype(jnp.int32), axis=1)[:, 0]
    return nll.mean()


if __name__ == "__main__":
    key = jax.random.PRNGKey(0)
    k1, k2, k3, k4 = jax.random.split(key, 4)

    num_classes = 10   # CELoss(num_classes=10)
    criterion = CELoss(alpha=0.1, beta=0.1, num_classes=num_classes)

    # 1) Plain (N, C) classification logits.
    x2d = jax.random.normal(k1, (64, num_classes), dtype=jnp.float32)
    t2d = jax.random.randint(k2, (64,), 0, num_classes, dtype=jnp.int32)
    out = jax.block_until_ready(criterion(x2d, t2d))
    ref = _reference_ce(x2d, t2d)
    assert jnp.allclose(out, ref, rtol=1e-5, atol=1e-5), (out, ref)

    # 2) Larger row count that forces 2 column tiles + a ragged masked tail.
    x2 = jax.random.normal(k3, (300, num_classes), dtype=jnp.float32)
    t2 = jax.random.randint(k4, (300,), 0, num_classes, dtype=jnp.int32)
    out2 = jax.block_until_ready(cross_entropy_loss(x2, t2))
    ref2 = _reference_ce(x2, t2)
    assert jnp.allclose(out2, ref2, rtol=1e-5, atol=1e-5), (out2, ref2)

    # 3) NCHW-style logits: native (N, C, HW) layout via 3-D BlockSpec, no transpose.
    xn = jax.random.normal(k1, (2, num_classes, 16, 16), dtype=jnp.float32)
    tn = jax.random.randint(k2, (2, 16, 16), 0, num_classes, dtype=jnp.int32)
    out3 = jax.block_until_ready(criterion(xn, tn))
    ref3 = _reference_ce(xn, tn)
    assert jnp.allclose(out3, ref3, rtol=1e-5, atol=1e-5), (out3, ref3)

    # 4) bf16 logits: math stays f32 in-kernel.
    out4 = jax.block_until_ready(
        cross_entropy_loss(x2d.astype(jnp.bfloat16), t2d))
    ref4 = _reference_ce(x2d.astype(jnp.bfloat16).astype(jnp.float32), t2d)
    assert jnp.allclose(out4, ref4, rtol=2e-2, atol=2e-2), (out4, ref4)

    print("KERNEL_OK")
</pallas_src>

<mosaic_0001>
module attributes {stable_mosaic.version = 11 : i64} {
  func.func @_ce_loss_kernel(%arg0: i32, %arg1: i32, %arg2: memref<1x10x64xf32, #tpu.memory_space<vmem>>, %arg3: memref<1x1x64xi32, #tpu.memory_space<vmem>>, %arg4: memref<1x8x128xf32, #tpu.memory_space<vmem>>) attributes {dimension_semantics = [#tpu.dimension_semantics<parallel>, #tpu.dimension_semantics<parallel>], iteration_bounds = array<i64: 1, 1>, scalar_prefetch = 0 : i64, scratch_operands = 0 : i64, tpu.core_type = #tpu.core_type<tc>, window_params = [{transform_indices = @transform_0, window_bounds = array<i64: 1, 10, 64>}, {transform_indices = @transform_1, window_bounds = array<i64: 1, 1, 64>}, {transform_indices = @transform_2, window_bounds = array<i64: 1, 8, 128>}]} {
    %c0 = arith.constant 0 : index
    %c0_0 = arith.constant 0 : index
    %c0_1 = arith.constant 0 : index
    %0 = vector.load %arg2[%c0, %c0_0, %c0_1] : memref<1x10x64xf32, #tpu.memory_space<vmem>>, vector<1x10x64xf32>
    %1 = vector.shape_cast %0 : vector<1x10x64xf32> to vector<10x64xf32>
    %c0_2 = arith.constant 0 : index
    %c0_3 = arith.constant 0 : index
    %c0_4 = arith.constant 0 : index
    %2 = vector.load %arg3[%c0_2, %c0_3, %c0_4] : memref<1x1x64xi32, #tpu.memory_space<vmem>>, vector<1x1x64xi32>
    %3 = vector.shape_cast %2 : vector<1x1x64xi32> to vector<1x64xi32>
    %cst = arith.constant dense<0xFF800000> : vector<64xf32>
    %4 = vector.multi_reduction <maximumf>, %1, %cst [0] : vector<10x64xf32> to vector<64xf32>
    %5 = vector.shape_cast %4 : vector<64xf32> to vector<1x64xf32>
    %6 = vector.broadcast %5 : vector<1x64xf32> to vector<10x64xf32>
    %7 = arith.subf %1, %6 : vector<10x64xf32>
    %8 = math.exp %7 : vector<10x64xf32>
    %cst_5 = arith.constant dense<0.000000e+00> : vector<64xf32>
    %9 = vector.multi_reduction <add>, %8, %cst_5 [0] : vector<10x64xf32> to vector<64xf32>
    %10 = vector.shape_cast %9 : vector<64xf32> to vector<1x64xf32>
    %11 = math.log %10 : vector<1x64xf32>
    %12 = arith.addf %11, %5 : vector<1x64xf32>
    %13 = tpu.iota {dimensions = array<i32: 0>} : vector<10x64xi32>
    %14 = vector.broadcast %3 : vector<1x64xi32> to vector<10x64xi32>
    %15 = arith.cmpi eq, %13, %14 : vector<10x64xi32>
    %cst_6 = arith.constant 0.000000e+00 : f32
    %16 = vector.broadcast %cst_6 : f32 to vector<10x64xf32>
    %17 = arith.select %15, %1, %16 : vector<10x64xi1>, vector<10x64xf32>
    %cst_7 = arith.constant dense<0.000000e+00> : vector<64xf32>
    %18 = vector.multi_reduction <add>, %17, %cst_7 [0] : vector<10x64xf32> to vector<64xf32>
    %19 = vector.shape_cast %18 : vector<64xf32> to vector<1x64xf32>
    %20 = arith.subf %12, %19 : vector<1x64xf32>
    %21 = vector.shape_cast %20 : vector<1x64xf32> to vector<1x1x64xf32>
    %cst_8 = arith.constant dense<0.000000e+00> : vector<1xf32>
    %22 = vector.multi_reduction <add>, %21, %cst_8 [1, 2] : vector<1x1x64xf32> to vector<1xf32>
    %23 = vector.shape_cast %22 : vector<1xf32> to vector<1x1x1xf32>
    %24 = vector.extract %23[0, 0, 0] : f32 from vector<1x1x1xf32>
    %25 = vector.broadcast %24 : f32 to vector<1x8x128xf32>
    %c0_9 = arith.constant 0 : index
    %c0_10 = arith.constant 0 : index
    %c0_11 = arith.constant 0 : index
    %26 = vector.load %arg4[%c0_9, %c0_10, %c0_11] : memref<1x8x128xf32, #tpu.memory_space<vmem>>, vector<1x8x128xf32>
    tpu.vector_store %arg4[%c0_9, %c0_10, %c0_11], %25 {strides = array<i32>} : memref<1x8x128xf32, #tpu.memory_space<vmem>>, vector<1x8x128xf32>,
    return
  }
  func.func @transform_0(%arg0: i32, %arg1: i32) -> (i32, i32, i32) {
    %c0_i32 = arith.constant 0 : i32
    %c0_i32_0 = arith.constant 0 : i32
    return %arg0, %c0_i32, %arg1 : i32, i32, i32
  }
  func.func @transform_1(%arg0: i32, %arg1: i32) -> (i32, i32, i32) {
    %c0_i32 = arith.constant 0 : i32
    %c0_i32_0 = arith.constant 0 : i32
    return %arg0, %c0_i32, %arg1 : i32, i32, i32
  }
  func.func @transform_2(%arg0: i32, %arg1: i32) -> (i32, i32, i32) {
    %c1_i32 = arith.constant 1 : i32
    %0 = arith.muli %arg0, %c1_i32 : i32
    %1 = arith.addi %0, %arg1 : i32
    %c0_i32 = arith.constant 0 : i32
    %c0_i32_0 = arith.constant 0 : i32
    %c0_i32_1 = arith.constant 0 : i32
    return %1, %c0_i32, %c0_i32_0 : i32, i32, i32
  }
}

</mosaic_0001>

<llo_original>
// kernel: tpu_custom_call.1
$region0: #{tpu_custom_call.1}
  #allocation0 [shape = 'u32[]', space=smem, size = 0x4, offset = 0x4, fixed_abs, tag = 'smem constant byte address 0x4 - core index']
  #allocation1 [shape = 'u32[144,128]{1,0:T(1,128)}', space=vmem, size = 0x12000, scoped, tag = 'internal scratch']
  %s0 = inlined_call_operand.vmem [shape: f32[1,10,64], index: 0, kind: input, shape index: {}]
  %s1 = inlined_call_operand.vmem [shape: s32[1,1,64], index: 1, kind: input, shape index: {}]
  %s2 = inlined_call_operand.hbm [shape: f32[1,8,128], index: 2, kind: output, shape index: {}]
  %s3 = sld [smem:[#allocation0]]
  $region18: #{tpu_custom_call.1} parent=0
    _
  %s5 = ssub.s32 1, %s3
  %s6 = scalar_select 0, %s5, %s3
  $region1: #{tpu_custom_call.1} parent=0
    #allocation2 [shape = 'u8[4096]{0}', space=vmem, size = 0x1000, scoped, tag = 'output window, operand 0, single buffered']
    #allocation3 [shape = 's32[1]{0}', space=sflag, size = 0x4, scoped, tag = 'scoped memory for tpu_custom_call.1']
    %7 = vsyncpa [#allocation3], 0
    // Predicated region
    $region2: #{tpu_custom_call.1} parent=1 // pred_check
      _
    $region3: #{tpu_custom_call.1} parent=1 // pred_check_branch
      %9 = sbr.rel (0) target = $region5
    $region4: #{tpu_custom_call.1} parent=1 // pred_region
      _
    $region5: #{tpu_custom_call.1} parent=1 // pred_fallthru
      _
    // Predicated region
    $region6: #{tpu_custom_call.1} parent=1 // pred_check
      _
    $region7: #{tpu_custom_call.1} parent=1 // pred_check_branch
      %11 = sbr.rel (0) target = $region9
    $region8: #{tpu_custom_call.1} parent=1 // pred_region
      _
    $region9: #{tpu_custom_call.1} parent=1 // pred_fallthru
      _
    %s12 = sadd.s32 0, 0
    %v13 = vld [vmem:[%s0] sm:$0xff]
    %v14 = vld [vmem:[%s0 + $0x8] sm:$0x3]
    %v15 = vld [vmem:[%s1] sm:$0x1]
    %vm16 = vcmask 523264
    %v17 = vsel %vm16, %v13, -inf
    %vm18 = vcmask 517120
    %v19 = vsel %vm18, %v14, -inf
    %v20 = vmax.f32 %v17, %v19
    %v21 = vrot.slane %v20, 4
    %v22 = vmax.f32 %v20, %v21
    %v23 = vrot.slane %v22, 2
    %v24 = vmax.f32 %v22, %v23
    %v25 = vrot.slane %v24, 1
    %v26 = vmax.f32 %v24, %v25
    %v27 = vsub.f32 %v13, %v26
    %v28 = vsub.f32 %v14, %v26
    %v29 = vmul.f32 %v27, 1.442695
    %v30 = vpow.pop %v29
    %v31 = vmul.f32 %v28, 1.442695
    %v32 = vpow.pop %v31
    %v33 = vsel %vm16, %v30, 0.0
    %v34 = vsel %vm18, %v32, 0.0
    %v35 = vadd.f32 %v33, %v34
    %v36 = vrot.slane %v35, 4
    %v37 = vadd.f32 %v35, %v36
    %v38 = vrot.slane %v37, 2
    %v39 = vadd.f32 %v37, %v38
    %v40 = vrot.slane %v39, 1
    %v41 = vadd.f32 %v39, %v40
    %v42 = vlog2.pop %v41
    %v43 = vmul.f32 %v42, 0.6931472
    %v44 = vadd.f32 %v43, %v26
    %v45 = vlaneseq
    %v46 = vshrl.u32 %v45, 7
    %v47 = vadd.s32 %v46, 8
    %v48 = vlaneseq
    %v49 = vshrl.u32 %v48, 7
    %v50 = vsub.s32 0, %v49
    %v51 = vrot.slane %v15, %v50
    %vm52 = vcmp.eq.s32.totalorder %v46, %v51
    %vm53 = vcmp.eq.s32.totalorder %v47, %v51
    %v54 = vsel %vm52, %v13, 0.0
    %v55 = vsel %vm53, %v14, 0.0
    %v56 = vsel %vm16, %v54, 0.0
    %v57 = vsel %vm18, %v55, 0.0
    %v58 = vadd.f32 %v56, %v57
    %v59 = vrot.slane %v58, 4
    %v60 = vadd.f32 %v58, %v59
    %v61 = vrot.slane %v60, 2
    %v62 = vadd.f32 %v60, %v61
    %v63 = vrot.slane %v62, 1
    %v64 = vadd.f32 %v62, %v63
    %v65 = vsub.f32 %v44, %v64
    %vm66 = vcmask 516096
    %v67 = vsel %vm66, %v65, 0.0
    %68 = vadd.xlane.f32.xlu0 %v67
    %v69 = vpop.xlane.xlu0 %68
    %v70 = vrot.slane %v69, 4
    %v71 = vadd.f32 %v69, %v70
    %v72 = vrot.slane %v71, 2
    %v73 = vadd.f32 %v71, %v72
    %v74 = vrot.slane %v73, 1
    %v75 = vadd.f32 %v73, %v74
    %s76 = vtos %v75
    %v77 = vstv %s76
    %78 = vst [vmem:[#allocation2] sm:$0xff] %v77
    // Predicated region
    $region10: #{tpu_custom_call.1} parent=1 // pred_check
      _
    $region11: #{tpu_custom_call.1} parent=1 // pred_check_branch
      %80 = sbr.rel (0) target = $region13
    $region12: #{tpu_custom_call.1} parent=1 // pred_region
      %s81 = sadd.s32 0, 0
      %s83 = ssub.s32 128, 128
      %84 = vsyncadd [#allocation3], %s83
      %s85 = smul.addr %s81, 128
      %s86 = scalar_lea.hbm %s2, %s85
      %s88 = sshll.u32 [#allocation2], 4
      %s89 = int_to_ptr.vmem [resolvable:$true] %s88
      %91 = dma.vmem_to_hbm [thread:$0]  %s89, 128, %s86, [#allocation3]
    $region13: #{tpu_custom_call.1} parent=1 // pred_fallthru
      _
    // Predicated region
    $region14: #{tpu_custom_call.1} parent=1 // pred_check
      _
    $region15: #{tpu_custom_call.1} parent=1 // pred_check_branch
      %93 = sbr.rel (0) target = $region17
    $region16: #{tpu_custom_call.1} parent=1 // pred_region
      %94 = dma.done [#allocation3], 128
    $region17: #{tpu_custom_call.1} parent=1 // pred_fallthru
      _
    %95 = vsyncpa [#allocation3], 1

</llo_original>
